<compile_context>
chip_gen: v6e
topology: v6e:2x2x1
jax: 0.10.0
libtpu: 0.0.40
codegen_flags: <defaults>
</compile_context>

<pallas_src>
import math
from typing import NamedTuple, Tuple

import jax
import jax.numpy as jnp
from jax.experimental import pallas as pl
from jax.experimental.pallas import tpu as pltpu

LANE = 128      # vreg lane width (last dim)
SUBLANE = 8     # vreg sublane width (second-to-last dim)


def _round_up(n: int, m: int) -> int:
    return ((n + m - 1) // m) * m


def _cdiv(a: int, b: int) -> int:
    return -(-a // b)


def _tpu_generation() -> int:
    try:
        kind = jax.devices()[0].device_kind.lower()
    except Exception:
        return 6
    for g in (7, 6, 5, 4, 3, 2):
        if f"v{g}" in kind:
            return g
    return 6


def _vmem_limit_bytes() -> int:
    cap = None
    try:
        cap = getattr(pltpu.get_tpu_info(), "vmem_capacity_bytes", None)
    except Exception:
        cap = None
    if not cap:
        cap = (64 if _tpu_generation() >= 7 else 128) * 1024 * 1024
    # Leave headroom for compiler-internal scratch; cap at 112 MiB.
    return min(int(cap * 0.8), 112 * 1024 * 1024)


def _feature_pad(d: int, gen: int) -> int:
    """Lane-dense padding; 256-aligned on v6e/v7x (2x256 MXU) for wide dims."""
    if d <= LANE:
        return LANE
    mxu = 256 if gen >= 6 else 128
    return _round_up(d, mxu)


# ----------------------------------------------------------------------------
# Parameter preparation (done ONCE, outside the per-call path)
# ----------------------------------------------------------------------------

class PreparedParams(NamedTuple):
    weights: Tuple[jax.Array, ...]   # bf16, padded [pdims[i], pdims[i+1]]
    biases: Tuple[jax.Array, ...]    # f32,  padded [1, pdims[i+1]]
    dims: Tuple[int, ...]            # true feature dims per layer boundary
    pdims: Tuple[int, ...]           # padded feature dims


def prepare_params(params, *, generation=None) -> PreparedParams:
    """Pad + cast weights/biases once so each forward call only DMAs them."""
    gen = _tpu_generation() if generation is None else generation
    dims = [params[0][0].shape[0]] + [W.shape[1] for W, _ in params]
    pdims = [_feature_pad(d, gen) for d in dims]
    ws, bs = [], []
    for i, (W, b) in enumerate(params):
        Wp = jnp.zeros((pdims[i], pdims[i + 1]), jnp.bfloat16)
        Wp = Wp.at[: W.shape[0], : W.shape[1]].set(W.astype(jnp.bfloat16))
        bp = jnp.zeros((1, pdims[i + 1]), jnp.float32)
        bp = bp.at[0, : b.shape[0]].set(b.astype(jnp.float32))
        ws.append(Wp)
        bs.append(bp)
    return PreparedParams(tuple(ws), tuple(bs), tuple(dims), tuple(pdims))


# ----------------------------------------------------------------------------
# Fused schedule: the whole layer chain in one kernel, weights VMEM-resident
# ----------------------------------------------------------------------------

def _make_fused_kernel(n_layers: int):
    def kernel(*refs):
        # refs = (x_ref, w0, b0, w1, b1, ..., o_ref)
        x_ref = refs[0]
        o_ref = refs[-1]
        p = refs[1:-1]
        h = x_ref[...]                                   # bf16 [tile_b, in_pad]
        for i in range(n_layers):
            w = p[2 * i][...]                            # bf16 [in_pad, out_pad]
            b = p[2 * i + 1][...]                        # f32  [1, out_pad]
            acc = jnp.dot(h, w, preferred_element_type=jnp.float32) + b
            h = acc.astype(jnp.bfloat16) if i + 1 < n_layers else acc
        o_ref[...] = h.astype(o_ref.dtype)
    return kernel


def _fused_forward(xp, prep, tile_b, batch_pad, out_dtype, vmem_limit,
                   single_buffer_weights):
    n_layers = len(prep.weights)
    pdims = prep.pdims
    wkw = {"pipeline_mode": pl.Buffered(1)} if single_buffer_weights else {}

    in_specs = [pl.BlockSpec((tile_b, pdims[0]), lambda i: (i, 0))]
    for li in range(n_layers):
        # Constant index_map -> weights/biases stay VMEM-resident across batch
        # tiles; Buffered(1) avoids a pointless second buffer.
        in_specs.append(pl.BlockSpec((pdims[li], pdims[li + 1]),
                                     lambda i: (0, 0), **wkw))
        in_specs.append(pl.BlockSpec((1, pdims[li + 1]),
                                     lambda i: (0, 0), **wkw))
    out_specs = pl.BlockSpec((tile_b, pdims[-1]), lambda i: (i, 0))

    flat = []
    for W, b in zip(prep.weights, prep.biases):
        flat += [W, b]

    flops = 2 * batch_pad * sum(pdims[i] * pdims[i + 1] for i in range(n_layers))
    bytes_accessed = (
        xp.size * xp.dtype.itemsize
        + sum(f.size * f.dtype.itemsize for f in flat)
        + batch_pad * pdims[-1] * jnp.dtype(out_dtype).itemsize
    )

    return pl.pallas_call(
        _make_fused_kernel(n_layers),
        out_shape=jax.ShapeDtypeStruct((batch_pad, pdims[-1]), out_dtype),
        grid=(batch_pad // tile_b,),
        in_specs=in_specs,
        out_specs=out_specs,
        compiler_params=pltpu.CompilerParams(
            dimension_semantics=("parallel",),   # megacore split on v7x
            vmem_limit_bytes=vmem_limit,
        ),
        cost_estimate=pl.CostEstimate(
            flops=flops, transcendentals=0, bytes_accessed=bytes_accessed
        ),
    )(xp, *flat)


# ----------------------------------------------------------------------------
# Layer-wise fallback schedule: one K-tiled matmul+bias kernel per layer
# ----------------------------------------------------------------------------

def _linear_kernel(x_ref, w_ref, b_ref, o_ref, acc_ref):
    k = pl.program_id(2)

    @pl.when(k == 0)
    def _():
        acc_ref[...] = jnp.zeros_like(acc_ref)

    acc_ref[...] += jnp.dot(x_ref[...], w_ref[...],
                            preferred_element_type=jnp.float32)

    @pl.when(k == pl.num_programs(2) - 1)
    def _():
        o_ref[...] = (acc_ref[...] + b_ref[...]).astype(o_ref.dtype)


def _pick_tile(dim: int) -> int:
    for t in (512, 256, 128):
        if dim % t == 0:
            return min(t, dim)
    return dim   # pdims are multiples of 128, so this is unreachable


def _layerwise_linear(h, W, b, tile_b, out_dtype, vmem_limit):
    Mp, Kp = h.shape
    Np = W.shape[1]
    tm, tn, tk = tile_b, _pick_tile(Np), _pick_tile(Kp)
    grid = (Mp // tm, Np // tn, Kp // tk)
    return pl.pallas_call(
        _linear_kernel,
        out_shape=jax.ShapeDtypeStruct((Mp, Np), out_dtype),
        grid=grid,
        in_specs=[
            pl.BlockSpec((tm, tk), lambda i, j, k: (i, k)),
            pl.BlockSpec((tk, tn), lambda i, j, k: (k, j)),
            pl.BlockSpec((1, tn), lambda i, j, k: (0, j)),
        ],
        out_specs=pl.BlockSpec((tm, tn), lambda i, j, k: (i, j)),
        scratch_shapes=[pltpu.VMEM((tm, tn), jnp.float32)],
        compiler_params=pltpu.CompilerParams(
            dimension_semantics=("parallel", "parallel", "arbitrary"),
            vmem_limit_bytes=vmem_limit,
        ),
    )(h, W, b)


# ----------------------------------------------------------------------------
# Public forward
# ----------------------------------------------------------------------------

def sequential_forward(x, params, *, tile_b=None, out_dtype=jnp.float32,
                       schedule="auto", slice_output=True):
    """Forward pass of Sequential([Linear, ...]) (x @ W + b per layer).

    `params`: either a raw list of (W, b) f32 pairs or a PreparedParams
    (pre-padded / bf16-cast once via prepare_params — preferred for repeated
    inference). bf16 MXU operands with f32 accumulation.
    schedule: "auto" | "fused" | "layerwise" | "xla".
    """
    raw_params = None if isinstance(params, PreparedParams) else params
    prep = params if isinstance(params, PreparedParams) else prepare_params(params)
    n_layers = len(prep.weights)
    batch, in_features = x.shape
    assert in_features == prep.dims[0]
    out_features = prep.dims[-1]
    pdims = prep.pdims
    gen = _tpu_generation()
    vmem_limit = _vmem_limit_bytes()

    # ---- schedule selection -------------------------------------------------
    if schedule == "auto":
        # Tiny regime: padded FLOPs >> real FLOPs and per-call overhead
        # dominates; plain XLA is faster than any Pallas tuning here.
        schedule = "xla" if (max(pdims) <= LANE and batch <= 1024) else "fused"

    if schedule == "xla":
        h = x.astype(jnp.float32)
        for i in range(n_layers):
            if raw_params is not None:
                W = raw_params[i][0].astype(jnp.float32)
                b = raw_params[i][1].astype(jnp.float32)
            else:
                W = prep.weights[i][: prep.dims[i], : prep.dims[i + 1]].astype(jnp.float32)
                b = prep.biases[i][0, : prep.dims[i + 1]]
            h = h @ W + b
        return h.astype(out_dtype)

    # ---- batch tiling (no round-up to a full tile) --------------------------
    target_tile = tile_b if tile_b is not None else (256 if gen >= 7 else 512)
    target_tile = max(SUBLANE, _round_up(int(target_tile), SUBLANE))
    batch8 = _round_up(batch, SUBLANE)
    n_tiles = max(1, _cdiv(batch8, target_tile))
    if n_tiles == 1 and batch8 >= 2 * SUBLANE:
        n_tiles = 2          # give v7x's second TensorCore a tile to work on
    tb = _round_up(_cdiv(batch8, n_tiles), SUBLANE)

    # ---- VMEM budget check / graceful fallback ------------------------------
    out_itemsize = jnp.dtype(out_dtype).itemsize

    def fused_vmem(tb_):
        x_b = 2 * tb_ * pdims[0] * 2                         # streamed x tile
        o_b = 2 * tb_ * pdims[-1] * out_itemsize             # streamed out tile
        w_b = sum(pdims[i] * pdims[i + 1] * 2 for i in range(n_layers))
        b_b = sum(pdims[i + 1] * 4 for i in range(n_layers))
        act = 2 * tb_ * max(pdims) * 4                       # f32 temporaries
        return x_b + o_b + w_b + b_b + act

    budget = int(vmem_limit * 0.9)
    if schedule == "fused":
        while fused_vmem(tb) > budget and tb > SUBLANE:
            tb = max(SUBLANE, _round_up(tb // 2, SUBLANE))
        if fused_vmem(tb) > budget:
            schedule = "layerwise"   # weights don't fit residency (e.g. v7x)

    n_tiles = _cdiv(batch8, tb)
    batch_pad = n_tiles * tb

    # ---- pad x (batch to tile multiple, features to lane-dense width) -------
    xp = jnp.zeros((batch_pad, pdims[0]), jnp.bfloat16)
    xp = xp.at[:batch, :in_features].set(x.astype(jnp.bfloat16))

    if schedule == "fused":
        try:
            out_padded = _fused_forward(xp, prep, tb, batch_pad, out_dtype,
                                        vmem_limit, single_buffer_weights=True)
        except Exception:
            # pipeline_mode=pl.Buffered(1) unsupported on this jax version ->
            # retry with default double-buffered specs (still correct).
            out_padded = _fused_forward(xp, prep, tb, batch_pad, out_dtype,
                                        vmem_limit, single_buffer_weights=False)
    elif schedule == "layerwise":
        h = xp
        for i in range(n_layers):
            od = out_dtype if i + 1 == n_layers else jnp.bfloat16
            h = _layerwise_linear(h, prep.weights[i], prep.biases[i], tb, od,
                                  vmem_limit)
        out_padded = h
    else:
        raise ValueError(f"unknown schedule: {schedule}")

    if not slice_output:
        return out_padded              # let downstream padded kernels consume
    return out_padded[:batch, :out_features]


# ----------------------------------------------------------------------------
# Init matching the spec's Linear (U(-stdv, stdv), stdv = 1/sqrt(out_features))
# ----------------------------------------------------------------------------

def init_linear(key, in_features, out_features):
    stdv = 1.0 / math.sqrt(out_features)
    kw, kb = jax.random.split(key)
    W = jax.random.uniform(kw, (in_features, out_features),
                           minval=-stdv, maxval=stdv, dtype=jnp.float32)
    b = jax.random.uniform(kb, (out_features,),
                           minval=-stdv, maxval=stdv, dtype=jnp.float32)
    return W, b


if __name__ == "__main__":
    key = jax.random.PRNGKey(0)
    k_x, k0, k1, k2 = jax.random.split(key, 4)

    # Sequential([Linear(32, 64), Linear(64, 64), Linear(64, 16)])
    layer_dims = [(32, 64), (64, 64), (64, 16)]
    params = [init_linear(k, i, o) for k, (i, o) in zip((k0, k1, k2), layer_dims)]

    batch = 8
    x = jax.random.normal(k_x, (batch, layer_dims[0][0]), dtype=jnp.float32)

    # Pure-JAX f32 reference of the same forward chain.
    ref = x
    for W, b in params:
        ref = ref @ W + b

    # Hoist padding/cast out of the per-call path (done once).
    prep = prepare_params(params)

    # 1) fused Pallas kernel (whole network VMEM-resident).
    out_fused = jax.block_until_ready(sequential_forward(x, prep, schedule="fused"))
    # 2) layer-wise K-tiled Pallas fallback path.
    out_layer = jax.block_until_ready(sequential_forward(x, prep, schedule="layerwise"))
    # 3) auto: at these toy sizes it picks the non-Pallas XLA fast path.
    out_auto = jax.block_until_ready(sequential_forward(x, params, schedule="auto"))

    for name, out in (("fused", out_fused), ("layerwise", out_layer),
                      ("auto", out_auto)):
        assert out.shape == (batch, layer_dims[-1][1]), (name, out.shape)
        err = float(jnp.max(jnp.abs(out - ref)))
        # bf16 MXU operands with f32 accumulation -> relaxed tolerance.
        assert jnp.allclose(out, ref, atol=5e-2, rtol=5e-2), (name, err)

    # TODO(synk): backward(), update(), set_Lr() of the original module are
    # training-side and intentionally not implemented in this forward kernel.
    print("KERNEL_OK")
</pallas_src>

<mosaic_0001>
module attributes {stable_mosaic.version = 11 : i64} {
  func.func @kernel(%arg0: i32, %arg1: memref<8x128xbf16, #tpu.memory_space<vmem>>, %arg2: memref<128x128xbf16, #tpu.memory_space<vmem>>, %arg3: memref<1x128xf32, #tpu.memory_space<vmem>>, %arg4: memref<128x128xbf16, #tpu.memory_space<vmem>>, %arg5: memref<1x128xf32, #tpu.memory_space<vmem>>, %arg6: memref<128x128xbf16, #tpu.memory_space<vmem>>, %arg7: memref<1x128xf32, #tpu.memory_space<vmem>>, %arg8: memref<8x128xf32, #tpu.memory_space<vmem>>) attributes {dimension_semantics = [#tpu.dimension_semantics<parallel>], iteration_bounds = array<i64: 1>, scalar_prefetch = 0 : i64, scratch_operands = 0 : i64, tpu.core_type = #tpu.core_type<tc>, window_params = [{transform_indices = @transform_0, window_bounds = array<i64: 8, 128>}, {pipeline_mode = #tpu.pipeline_mode<synchronous>, transform_indices = @transform_1, window_bounds = array<i64: 128, 128>}, {pipeline_mode = #tpu.pipeline_mode<synchronous>, transform_indices = @transform_2, window_bounds = array<i64: 1, 128>}, {pipeline_mode = #tpu.pipeline_mode<synchronous>, transform_indices = @transform_3, window_bounds = array<i64: 128, 128>}, {pipeline_mode = #tpu.pipeline_mode<synchronous>, transform_indices = @transform_4, window_bounds = array<i64: 1, 128>}, {pipeline_mode = #tpu.pipeline_mode<synchronous>, transform_indices = @transform_5, window_bounds = array<i64: 128, 128>}, {pipeline_mode = #tpu.pipeline_mode<synchronous>, transform_indices = @transform_6, window_bounds = array<i64: 1, 128>}, {transform_indices = @transform_7, window_bounds = array<i64: 8, 128>}]} {
    %c0 = arith.constant 0 : index
    %c0_0 = arith.constant 0 : index
    %0 = vector.load %arg1[%c0, %c0_0] : memref<8x128xbf16, #tpu.memory_space<vmem>>, vector<8x128xbf16>
    %c0_1 = arith.constant 0 : index
    %c0_2 = arith.constant 0 : index
    %1 = vector.load %arg2[%c0_1, %c0_2] : memref<128x128xbf16, #tpu.memory_space<vmem>>, vector<128x128xbf16>
    %c0_3 = arith.constant 0 : index
    %c0_4 = arith.constant 0 : index
    %2 = vector.load %arg3[%c0_3, %c0_4] : memref<1x128xf32, #tpu.memory_space<vmem>>, vector<1x128xf32>
    %cst = arith.constant dense<0.000000e+00> : vector<8x128xf32>
    %3 = tpu.matmul %0, %1, %cst {dimension_numbers = #tpu.dot_dimension_numbers<[1], [0], [0], [1], [0, 0, 1, 1], [], []>} : vector<8x128xbf16>, vector<128x128xbf16>, vector<8x128xf32> -> vector<8x128xf32>
    %4 = vector.broadcast %2 : vector<1x128xf32> to vector<8x128xf32>
    %5 = arith.addf %3, %4 : vector<8x128xf32>
    %6 = arith.truncf %5 : vector<8x128xf32> to vector<8x128xbf16>
    %c0_5 = arith.constant 0 : index
    %c0_6 = arith.constant 0 : index
    %7 = vector.load %arg4[%c0_5, %c0_6] : memref<128x128xbf16, #tpu.memory_space<vmem>>, vector<128x128xbf16>
    %c0_7 = arith.constant 0 : index
    %c0_8 = arith.constant 0 : index
    %8 = vector.load %arg5[%c0_7, %c0_8] : memref<1x128xf32, #tpu.memory_space<vmem>>, vector<1x128xf32>
    %cst_9 = arith.constant dense<0.000000e+00> : vector<8x128xf32>
    %9 = tpu.matmul %6, %7, %cst_9 {dimension_numbers = #tpu.dot_dimension_numbers<[1], [0], [0], [1], [0, 0, 1, 1], [], []>} : vector<8x128xbf16>, vector<128x128xbf16>, vector<8x128xf32> -> vector<8x128xf32>
    %10 = vector.broadcast %8 : vector<1x128xf32> to vector<8x128xf32>
    %11 = arith.addf %9, %10 : vector<8x128xf32>
    %12 = arith.truncf %11 : vector<8x128xf32> to vector<8x128xbf16>
    %c0_10 = arith.constant 0 : index
    %c0_11 = arith.constant 0 : index
    %13 = vector.load %arg6[%c0_10, %c0_11] : memref<128x128xbf16, #tpu.memory_space<vmem>>, vector<128x128xbf16>
    %c0_12 = arith.constant 0 : index
    %c0_13 = arith.constant 0 : index
    %14 = vector.load %arg7[%c0_12, %c0_13] : memref<1x128xf32, #tpu.memory_space<vmem>>, vector<1x128xf32>
    %cst_14 = arith.constant dense<0.000000e+00> : vector<8x128xf32>
    %15 = tpu.matmul %12, %13, %cst_14 {dimension_numbers = #tpu.dot_dimension_numbers<[1], [0], [0], [1], [0, 0, 1, 1], [], []>} : vector<8x128xbf16>, vector<128x128xbf16>, vector<8x128xf32> -> vector<8x128xf32>
    %16 = vector.broadcast %14 : vector<1x128xf32> to vector<8x128xf32>
    %17 = arith.addf %15, %16 : vector<8x128xf32>
    %c0_15 = arith.constant 0 : index
    %c0_16 = arith.constant 0 : index
    %18 = vector.load %arg8[%c0_15, %c0_16] : memref<8x128xf32, #tpu.memory_space<vmem>>, vector<8x128xf32>
    tpu.vector_store %arg8[%c0_15, %c0_16], %17 {strides = array<i32>} : memref<8x128xf32, #tpu.memory_space<vmem>>, vector<8x128xf32>,
    return
  }
  func.func @transform_0(%arg0: i32) -> (i32, i32) {
    %c0_i32 = arith.constant 0 : i32
    %c0_i32_0 = arith.constant 0 : i32
    return %arg0, %c0_i32 : i32, i32
  }
  func.func @transform_1(%arg0: i32) -> (i32, i32) {
    %c0_i32 = arith.constant 0 : i32
    %c0_i32_0 = arith.constant 0 : i32
    %c0_i32_1 = arith.constant 0 : i32
    return %c0_i32, %c0_i32_0 : i32, i32
  }
  func.func @transform_2(%arg0: i32) -> (i32, i32) {
    %c0_i32 = arith.constant 0 : i32
    %c0_i32_0 = arith.constant 0 : i32
    %c0_i32_1 = arith.constant 0 : i32
    return %c0_i32, %c0_i32_0 : i32, i32
  }
  func.func @transform_3(%arg0: i32) -> (i32, i32) {
    %c0_i32 = arith.constant 0 : i32
    %c0_i32_0 = arith.constant 0 : i32
    %c0_i32_1 = arith.constant 0 : i32
    return %c0_i32, %c0_i32_0 : i32, i32
  }
  func.func @transform_4(%arg0: i32) -> (i32, i32) {
    %c0_i32 = arith.constant 0 : i32
    %c0_i32_0 = arith.constant 0 : i32
    %c0_i32_1 = arith.constant 0 : i32
    return %c0_i32, %c0_i32_0 : i32, i32
  }
  func.func @transform_5(%arg0: i32) -> (i32, i32) {
    %c0_i32 = arith.constant 0 : i32
    %c0_i32_0 = arith.constant 0 : i32
    %c0_i32_1 = arith.constant 0 : i32
    return %c0_i32, %c0_i32_0 : i32, i32
  }
  func.func @transform_6(%arg0: i32) -> (i32, i32) {
    %c0_i32 = arith.constant 0 : i32
    %c0_i32_0 = arith.constant 0 : i32
    %c0_i32_1 = arith.constant 0 : i32
    return %c0_i32, %c0_i32_0 : i32, i32
  }
  func.func @transform_7(%arg0: i32) -> (i32, i32) {
    %c0_i32 = arith.constant 0 : i32
    %c0_i32_0 = arith.constant 0 : i32
    return %arg0, %c0_i32 : i32, i32
  }
}

module attributes {stable_mosaic.version = 11 : i64} {
  func.func @kernel(%arg0: i32, %arg1: memref<8x128xbf16, #tpu.memory_space<vmem>>, %arg2: memref<128x128xbf16, #tpu.memory_space<vmem>>, %arg3: memref<1x128xf32, #tpu.memory_space<vmem>>, %arg4: memref<128x128xbf16, #tpu.memory_space<vmem>>, %arg5: memref<1x128xf32, #tpu.memory_space<vmem>>, %arg6: memref<128x128xbf16, #tpu.memory_space<vmem>>, %arg7: memref<1x128xf32, #tpu.memory_space<vmem>>, %arg8: memref<8x128xf32, #tpu.memory_space<vmem>>) attributes {dimension_semantics = [#tpu.dimension_semantics<parallel>], iteration_bounds = array<i64: 1>, scalar_prefetch = 0 : i64, scratch_operands = 0 : i64, tpu.core_type = #tpu.core_type<tc>, window_params = [{transform_indices = @transform_0, window_bounds = array<i64: 8, 128>}, {pipeline_mode = #tpu.pipeline_mode<synchronous>, transform_indices = @transform_1, window_bounds = array<i64: 128, 128>}, {pipeline_mode = #tpu.pipeline_mode<synchronous>, transform_indices = @transform_2, window_bounds = array<i64: 1, 128>}, {pipeline_mode = #tpu.pipeline_mode<synchronous>, transform_indices = @transform_3, window_bounds = array<i64: 128, 128>}, {pipeline_mode = #tpu.pipeline_mode<synchronous>, transform_indices = @transform_4, window_bounds = array<i64: 1, 128>}, {pipeline_mode = #tpu.pipeline_mode<synchronous>, transform_indices = @transform_5, window_bounds = array<i64: 128, 128>}, {pipeline_mode = #tpu.pipeline_mode<synchronous>, transform_indices = @transform_6, window_bounds = array<i64: 1, 128>}, {transform_indices = @transform_7, window_bounds = array<i64: 8, 128>}]} {
    %c0 = arith.constant 0 : index
    %c0_0 = arith.constant 0 : index
    %0 = vector.load %arg1[%c0, %c0_0] : memref<8x128xbf16, #tpu.memory_space<vmem>>, vector<8x128xbf16>
    %c0_1 = arith.constant 0 : index
    %c0_2 = arith.constant 0 : index
    %1 = vector.load %arg2[%c0_1, %c0_2] : memref<128x128xbf16, #tpu.memory_space<vmem>>, vector<128x128xbf16>
    %c0_3 = arith.constant 0 : index
    %c0_4 = arith.constant 0 : index
    %2 = vector.load %arg3[%c0_3, %c0_4] : memref<1x128xf32, #tpu.memory_space<vmem>>, vector<1x128xf32>
    %cst = arith.constant dense<0.000000e+00> : vector<8x128xf32>
    %3 = tpu.matmul %0, %1, %cst {dimension_numbers = #tpu.dot_dimension_numbers<[1], [0], [0], [1], [0, 0, 1, 1], [], []>} : vector<8x128xbf16>, vector<128x128xbf16>, vector<8x128xf32> -> vector<8x128xf32>
    %4 = vector.broadcast %2 : vector<1x128xf32> to vector<8x128xf32>
    %5 = arith.addf %3, %4 : vector<8x128xf32>
    %6 = arith.truncf %5 : vector<8x128xf32> to vector<8x128xbf16>
    %c0_5 = arith.constant 0 : index
    %c0_6 = arith.constant 0 : index
    %7 = vector.load %arg4[%c0_5, %c0_6] : memref<128x128xbf16, #tpu.memory_space<vmem>>, vector<128x128xbf16>
    %c0_7 = arith.constant 0 : index
    %c0_8 = arith.constant 0 : index
    %8 = vector.load %arg5[%c0_7, %c0_8] : memref<1x128xf32, #tpu.memory_space<vmem>>, vector<1x128xf32>
    %cst_9 = arith.constant dense<0.000000e+00> : vector<8x128xf32>
    %9 = tpu.matmul %6, %7, %cst_9 {dimension_numbers = #tpu.dot_dimension_numbers<[1], [0], [0], [1], [0, 0, 1, 1], [], []>} : vector<8x128xbf16>, vector<128x128xbf16>, vector<8x128xf32> -> vector<8x128xf32>
    %10 = vector.broadcast %8 : vector<1x128xf32> to vector<8x128xf32>
    %11 = arith.addf %9, %10 : vector<8x128xf32>
    %12 = arith.truncf %11 : vector<8x128xf32> to vector<8x128xbf16>
    %c0_10 = arith.constant 0 : index
    %c0_11 = arith.constant 0 : index
    %13 = vector.load %arg6[%c0_10, %c0_11] : memref<128x128xbf16, #tpu.memory_space<vmem>>, vector<128x128xbf16>
    %c0_12 = arith.constant 0 : index
    %c0_13 = arith.constant 0 : index
    %14 = vector.load %arg7[%c0_12, %c0_13] : memref<1x128xf32, #tpu.memory_space<vmem>>, vector<1x128xf32>
    %cst_14 = arith.constant dense<0.000000e+00> : vector<8x128xf32>
    %15 = tpu.matmul %12, %13, %cst_14 {dimension_numbers = #tpu.dot_dimension_numbers<[1], [0], [0], [1], [0, 0, 1, 1], [], []>} : vector<8x128xbf16>, vector<128x128xbf16>, vector<8x128xf32> -> vector<8x128xf32>
    %16 = vector.broadcast %14 : vector<1x128xf32> to vector<8x128xf32>
    %17 = arith.addf %15, %16 : vector<8x128xf32>
    %c0_15 = arith.constant 0 : index
    %c0_16 = arith.constant 0 : index
    %18 = vector.load %arg8[%c0_15, %c0_16] : memref<8x128xf32, #tpu.memory_space<vmem>>, vector<8x128xf32>
    tpu.vector_store %arg8[%c0_15, %c0_16], %17 {strides = array<i32>} : memref<8x128xf32, #tpu.memory_space<vmem>>, vector<8x128xf32>,
    return
  }
  func.func @transform_0(%arg0: i32) -> (i32, i32) {
    %c0_i32 = arith.constant 0 : i32
    %c0_i32_0 = arith.constant 0 : i32
    return %arg0, %c0_i32 : i32, i32
  }
  func.func @transform_1(%arg0: i32) -> (i32, i32) {
    %c0_i32 = arith.constant 0 : i32
    %c0_i32_0 = arith.constant 0 : i32
    %c0_i32_1 = arith.constant 0 : i32
    return %c0_i32, %c0_i32_0 : i32, i32
  }
  func.func @transform_2(%arg0: i32) -> (i32, i32) {
    %c0_i32 = arith.constant 0 : i32
    %c0_i32_0 = arith.constant 0 : i32
    %c0_i32_1 = arith.constant 0 : i32
    return %c0_i32, %c0_i32_0 : i32, i32
  }
  func.func @transform_3(%arg0: i32) -> (i32, i32) {
    %c0_i32 = arith.constant 0 : i32
    %c0_i32_0 = arith.constant 0 : i32
    %c0_i32_1 = arith.constant 0 : i32
    return %c0_i32, %c0_i32_0 : i32, i32
  }
  func.func @transform_4(%arg0: i32) -> (i32, i32) {
    %c0_i32 = arith.constant 0 : i32
    %c0_i32_0 = arith.constant 0 : i32
    %c0_i32_1 = arith.constant 0 : i32
    return %c0_i32, %c0_i32_0 : i32, i32
  }
  func.func @transform_5(%arg0: i32) -> (i32, i32) {
    %c0_i32 = arith.constant 0 : i32
    %c0_i32_0 = arith.constant 0 : i32
    %c0_i32_1 = arith.constant 0 : i32
    return %c0_i32, %c0_i32_0 : i32, i32
  }
  func.func @transform_6(%arg0: i32) -> (i32, i32) {
    %c0_i32 = arith.constant 0 : i32
    %c0_i32_0 = arith.constant 0 : i32
    %c0_i32_1 = arith.constant 0 : i32
    return %c0_i32, %c0_i32_0 : i32, i32
  }
  func.func @transform_7(%arg0: i32) -> (i32, i32) {
    %c0_i32 = arith.constant 0 : i32
    %c0_i32_0 = arith.constant 0 : i32
    return %arg0, %c0_i32 : i32, i32
  }
}

</mosaic_0001>

<llo_original>
// kernel: tpu_custom_call.1
$region0: #{tpu_custom_call.1}
  #allocation0 [shape = 'u32[]', space=smem, size = 0x4, offset = 0x4, fixed_abs, tag = 'smem constant byte address 0x4 - core index']
  #allocation1 [shape = 'u32[144,128]{1,0:T(1,128)}', space=vmem, size = 0x12000, scoped, tag = 'internal scratch']
  %s0 = inlined_call_operand.hbm [shape: bf16[8,128], index: 0, kind: input, shape index: {}]
  %s1 = inlined_call_operand.hbm [shape: bf16[128,128], index: 1, kind: input, shape index: {}]
  %s2 = inlined_call_operand.vmem [shape: f32[1,128], index: 2, kind: input, shape index: {}]
  %s3 = inlined_call_operand.hbm [shape: bf16[128,128], index: 3, kind: input, shape index: {}]
  %s4 = inlined_call_operand.vmem [shape: f32[1,128], index: 4, kind: input, shape index: {}]
  %s5 = inlined_call_operand.hbm [shape: bf16[128,128], index: 5, kind: input, shape index: {}]
  %s6 = inlined_call_operand.vmem [shape: f32[1,128], index: 6, kind: input, shape index: {}]
  %s7 = inlined_call_operand.hbm [shape: f32[8,128], index: 7, kind: output, shape index: {}]
  %s8 = sld [smem:[#allocation0]]
  $region54: #{tpu_custom_call.1} parent=0
    _
  %s10 = ssub.s32 1, %s8
  %s11 = scalar_select 0, %s10, %s8
  $region1: #{tpu_custom_call.1} parent=0
    #allocation2 [shape = 'u8[2048]{0}', space=vmem, size = 0x800, scoped, tag = 'input window, operand 0, single buffered']
    #allocation3 [shape = 's32[1]{0}', space=sflag, size = 0x4, scoped, tag = 'scoped memory for tpu_custom_call.1']
    #allocation4 [shape = 's32[1]{0}', space=sflag, size = 0x4, scoped, tag = 'scoped memory for tpu_custom_call.1']
    #allocation5 [shape = 'u8[32768]{0}', space=vmem, size = 0x8000, scoped, tag = 'input window, operand 1, single buffered']
    #allocation6 [shape = 's32[1]{0}', space=sflag, size = 0x4, scoped, tag = 'scoped memory for tpu_custom_call.1']
    #allocation7 [shape = 'u8[32768]{0}', space=vmem, size = 0x8000, scoped, tag = 'input window, operand 3, single buffered']
    #allocation8 [shape = 'u8[32768]{0}', space=vmem, size = 0x8000, scoped, tag = 'input window, operand 5, single buffered']
    #allocation9 [shape = 's32[1]{0}', space=sflag, size = 0x4, scoped, tag = 'scoped memory for tpu_custom_call.1']
    #allocation10 [shape = 'u8[4096]{0}', space=vmem, size = 0x1000, scoped, tag = 'output window, operand 0, single buffered']
    %12 = vsyncpa [#allocation3], 0
    %13 = vsyncpa [#allocation6], 0
    %14 = vsyncpa [#allocation9], 0
    %15 = vsyncpa [#allocation4], 0
    // Predicated region
    $region2: #{tpu_custom_call.1} parent=1 // pred_check
      _
    $region3: #{tpu_custom_call.1} parent=1 // pred_check_branch
      %17 = sbr.rel (0) target = $region5
    $region4: #{tpu_custom_call.1} parent=1 // pred_region
      %s19 = ssub.s32 64, 64
      %20 = vsyncadd [#allocation3], %s19
      %s22 = sshll.u32 [#allocation2], 4
      %s23 = int_to_ptr.vmem [resolvable:$true] %s22
      %25 = dma.hbm_to_vmem [thread:$0]  %s0, 64, %s23, [#allocation3]
    $region5: #{tpu_custom_call.1} parent=1 // pred_fallthru
      _
    // Predicated region
    $region6: #{tpu_custom_call.1} parent=1 // pred_check
      _
    $region7: #{tpu_custom_call.1} parent=1 // pred_check_branch
      %27 = sbr.rel (0) target = $region9
    $region8: #{tpu_custom_call.1} parent=1 // pred_region
      %s29 = ssub.s32 1024, 1024
      %30 = vsyncadd [#allocation6], %s29
      %s31 = sshll.u32 [#allocation5], 4
      %s32 = int_to_ptr.vmem [resolvable:$true] %s31
      %37 = dma.hbm_to_vmem [thread:$0]  %s1, 1024, %s32, [#allocation6], 64, 64, 4
    $region9: #{tpu_custom_call.1} parent=1 // pred_fallthru
      _
    // Predicated region
    $region10: #{tpu_custom_call.1} parent=1 // pred_check
      _
    $region11: #{tpu_custom_call.1} parent=1 // pred_check_branch
      %39 = sbr.rel (0) target = $region13
    $region12: #{tpu_custom_call.1} parent=1 // pred_region
      _
    $region13: #{tpu_custom_call.1} parent=1 // pred_fallthru
      _
    // Predicated region
    $region14: #{tpu_custom_call.1} parent=1 // pred_check
      _
    $region15: #{tpu_custom_call.1} parent=1 // pred_check_branch
      %41 = sbr.rel (0) target = $region17
    $region16: #{tpu_custom_call.1} parent=1 // pred_region
      %s43 = ssub.s32 1024, 1024
      %44 = vsyncadd [#allocation6], %s43
      %s45 = sshll.u32 [#allocation7], 4
      %s46 = int_to_ptr.vmem [resolvable:$true] %s45
      %51 = dma.hbm_to_vmem [thread:$0]  %s3, 1024, %s46, [#allocation6], 64, 64, 4
    $region17: #{tpu_custom_call.1} parent=1 // pred_fallthru
      _
    // Predicated region
    $region18: #{tpu_custom_call.1} parent=1 // pred_check
      _
    $region19: #{tpu_custom_call.1} parent=1 // pred_check_branch
      %53 = sbr.rel (0) target = $region21
    $region20: #{tpu_custom_call.1} parent=1 // pred_region
      _
    $region21: #{tpu_custom_call.1} parent=1 // pred_fallthru
      _
    // Predicated region
    $region22: #{tpu_custom_call.1} parent=1 // pred_check
      _
    $region23: #{tpu_custom_call.1} parent=1 // pred_check_branch
      %55 = sbr.rel (0) target = $region25
    $region24: #{tpu_custom_call.1} parent=1 // pred_region
      %s57 = ssub.s32 1024, 1024
      %58 = vsyncadd [#allocation9], %s57
      %s59 = sshll.u32 [#allocation8], 4
      %s60 = int_to_ptr.vmem [resolvable:$true] %s59
      %65 = dma.hbm_to_vmem [thread:$0]  %s5, 1024, %s60, [#allocation9], 64, 64, 4
    $region25: #{tpu_custom_call.1} parent=1 // pred_fallthru
      _
    // Predicated region
    $region26: #{tpu_custom_call.1} parent=1 // pred_check
      _
    $region27: #{tpu_custom_call.1} parent=1 // pred_check_branch
      %67 = sbr.rel (0) target = $region29
    $region28: #{tpu_custom_call.1} parent=1 // pred_region
      _
    $region29: #{tpu_custom_call.1} parent=1 // pred_fallthru
      _
    // Predicated region
    $region30: #{tpu_custom_call.1} parent=1 // pred_check
      _
    $region31: #{tpu_custom_call.1} parent=1 // pred_check_branch
      %69 = sbr.rel (0) target = $region33
    $region32: #{tpu_custom_call.1} parent=1 // pred_region
      %70 = dma.done [#allocation3], 64
    $region33: #{tpu_custom_call.1} parent=1 // pred_fallthru
      _
    // Predicated region
    $region34: #{tpu_custom_call.1} parent=1 // pred_check
      _
    $region35: #{tpu_custom_call.1} parent=1 // pred_check_branch
      %72 = sbr.rel (0) target = $region37
    $region36: #{tpu_custom_call.1} parent=1 // pred_region
      %73 = dma.done [#allocation6], 1024
    $region37: #{tpu_custom_call.1} parent=1 // pred_fallthru
      _
    // Predicated region
    $region38: #{tpu_custom_call.1} parent=1 // pred_check
      _
    $region39: #{tpu_custom_call.1} parent=1 // pred_check_branch
      %75 = sbr.rel (0) target = $region41
    $region40: #{tpu_custom_call.1} parent=1 // pred_region
      %76 = dma.done [#allocation6], 1024
    $region41: #{tpu_custom_call.1} parent=1 // pred_fallthru
      _
    // Predicated region
    $region42: #{tpu_custom_call.1} parent=1 // pred_check
      _
    $region43: #{tpu_custom_call.1} parent=1 // pred_check_branch
      %78 = sbr.rel (0) target = $region45
    $region44: #{tpu_custom_call.1} parent=1 // pred_region
      %79 = dma.done [#allocation9], 1024
    $region45: #{tpu_custom_call.1} parent=1 // pred_fallthru
      _
    %v81 = vld [vmem:[#allocation2] sm:$0xf]
    %v82 = vld [vmem:[#allocation5] sm:$0xf]
    %v83 = vld [vmem:[#allocation5 + $0x4] sm:$0xf]
    %v84 = vld [vmem:[#allocation5 + $0x8] sm:$0xf]
    %v85 = vld [vmem:[#allocation5 + $0xc] sm:$0xf]
    %v86 = vld [vmem:[#allocation5 + $0x10] sm:$0xf]
    %v87 = vld [vmem:[#allocation5 + $0x14] sm:$0xf]
    %v88 = vld [vmem:[#allocation5 + $0x18] sm:$0xf]
    %v89 = vld [vmem:[#allocation5 + $0x1c] sm:$0xf]
    %v90 = vld [vmem:[#allocation5 + $0x20] sm:$0xf]
    %v91 = vld [vmem:[#allocation5 + $0x24] sm:$0xf]
    %v92 = vld [vmem:[#allocation5 + $0x28] sm:$0xf]
    %v93 = vld [vmem:[#allocation5 + $0x2c] sm:$0xf]
    %v94 = vld [vmem:[#allocation5 + $0x30] sm:$0xf]
    %v95 = vld [vmem:[#allocation5 + $0x34] sm:$0xf]
    %v96 = vld [vmem:[#allocation5 + $0x38] sm:$0xf]
    %v97 = vld [vmem:[#allocation5 + $0x3c] sm:$0xf]
    %v98 = vld [vmem:[%s2] sm:$0x1]
    %v100 = vlaneseq
    %v101 = vshrl.u32 %v100, 7
    %v102 = vsub.s32 0, %v101
    %v103 = vrot.slane %v98, %v102
    %v121 = vunpack.c.l.b16 %v82
    %v122 = vunpack.c.l.b16 %v83
    %v123 = vunpack.c.l.b16 %v84
    %v124 = vunpack.c.l.b16 %v85
    %v125 = vunpack.c.l.b16 %v86
    %v126 = vunpack.c.l.b16 %v87
    %v127 = vunpack.c.l.b16 %v88
    %v128 = vunpack.c.l.b16 %v89
    %v129 = vunpack.c.l.b16 %v90
    %v130 = vunpack.c.l.b16 %v91
    %v131 = vunpack.c.l.b16 %v92
    %v132 = vunpack.c.l.b16 %v93
    %v133 = vunpack.c.l.b16 %v94
    %v134 = vunpack.c.l.b16 %v95
    %v135 = vunpack.c.l.b16 %v96
    %v136 = vunpack.c.l.b16 %v97
    %v137 = vpack.c.b16 %v122, %v121
    %v138 = vpack.c.b16 %v124, %v123
    %v139 = vpack.c.b16 %v126, %v125
    %v140 = vpack.c.b16 %v128, %v127
    %v141 = vpack.c.b16 %v130, %v129
    %v142 = vpack.c.b16 %v132, %v131
    %v143 = vpack.c.b16 %v134, %v133
    %v144 = vpack.c.b16 %v136, %v135
    %153 = vmatprep.subr.bf16.mxu0 0
    %154 = vmatpush1.bf16.msra.mxu0 %v144
    %155 = vmatprep.subr.bf16.mxu0 0
    %156 = vmatpush1.bf16.msra.mxu0 %v143
    %157 = vmatprep.subr.bf16.mxu0 0
    %158 = vmatpush1.bf16.msra.mxu0 %v142
    %159 = vmatprep.subr.bf16.mxu0 0
    %160 = vmatpush1.bf16.msra.mxu0 %v141
    %161 = vmatprep.subr.bf16.mxu0 0
    %162 = vmatpush1.bf16.msra.mxu0 %v140
    %163 = vmatprep.subr.bf16.mxu0 0
    %164 = vmatpush1.bf16.msra.mxu0 %v139
    %165 = vmatprep.subr.bf16.mxu0 0
    %166 = vmatpush1.bf16.msra.mxu0 %v138
    %167 = vmatprep.subr.bf16.mxu0 0
    %168 = vmatpush1.bf16.msra.mxu0 %v137
    %169 = vmatprep.subr.bf16.mxu0 0
    %170 = vmatpush2.bf16.msra.mxu0 0
    %171 = vmatprep.subr.bf16.mxu0 0
    %172 = vmatpush2.bf16.msra.mxu0 0
    %173 = vmatprep.subr.bf16.mxu0 0
    %174 = vmatpush2.bf16.msra.mxu0 0
    %175 = vmatprep.subr.bf16.mxu0 0
    %176 = vmatpush2.bf16.msra.mxu0 0
    %177 = vmatprep.subr.bf16.mxu0 0
    %178 = vmatpush2.bf16.msra.mxu0 0
    %179 = vmatprep.subr.bf16.mxu0 0
    %180 = vmatpush2.bf16.msra.mxu0 0
    %181 = vmatprep.subr.bf16.mxu0 0
    %182 = vmatpush2.bf16.msra.mxu0 0
    %183 = vmatprep.subr.bf16.mxu0 0
    %184 = vmatpush2.bf16.msra.mxu0 0
    %185 = vmatprep.mubr.bf16.mxu0 0
    %186 = vmatmul.mubr.bf16.gmra.mxu0 %v81
    %v187 = vpop.f32.mrf.mxu0
    %v188 = vadd.f32 %v103, %v187
    %v189 = vpop.f32.mrf.mxu0
    %v190 = vpop.f32.mrf.mxu0
    %v191 = vpop.f32.mrf.mxu0
    %192 = vdwg.mxu0
    %v193 = vpack.c.bf16 %v188, %v188
    %v194 = vld [vmem:[#allocation7] sm:$0xf]
    %v195 = vld [vmem:[#allocation7 + $0x4] sm:$0xf]
    %v196 = vld [vmem:[#allocation7 + $0x8] sm:$0xf]
    %v197 = vld [vmem:[#allocation7 + $0xc] sm:$0xf]
    %v198 = vld [vmem:[#allocation7 + $0x10] sm:$0xf]
    %v199 = vld [vmem:[#allocation7 + $0x14] sm:$0xf]
    %v200 = vld [vmem:[#allocation7 + $0x18] sm:$0xf]
    %v201 = vld [vmem:[#allocation7 + $0x1c] sm:$0xf]
    %v202 = vld [vmem:[#allocation7 + $0x20] sm:$0xf]
    %v203 = vld [vmem:[#allocation7 + $0x24] sm:$0xf]
    %v204 = vld [vmem:[#allocation7 + $0x28] sm:$0xf]
    %v205 = vld [vmem:[#allocation7 + $0x2c] sm:$0xf]
    %v206 = vld [vmem:[#allocation7 + $0x30] sm:$0xf]
    %v207 = vld [vmem:[#allocation7 + $0x34] sm:$0xf]
    %v208 = vld [vmem:[#allocation7 + $0x38] sm:$0xf]
    %v209 = vld [vmem:[#allocation7 + $0x3c] sm:$0xf]
    %v210 = vld [vmem:[%s4] sm:$0x1]
    %v212 = vlaneseq
    %v213 = vshrl.u32 %v212, 7
    %v214 = vsub.s32 0, %v213
    %v215 = vrot.slane %v210, %v214
    %v233 = vunpack.c.l.b16 %v194
    %v234 = vunpack.c.l.b16 %v195
    %v235 = vunpack.c.l.b16 %v196
    %v236 = vunpack.c.l.b16 %v197
    %v237 = vunpack.c.l.b16 %v198
    %v238 = vunpack.c.l.b16 %v199
    %v239 = vunpack.c.l.b16 %v200
    %v240 = vunpack.c.l.b16 %v201
    %v241 = vunpack.c.l.b16 %v202
    %v242 = vunpack.c.l.b16 %v203
    %v243 = vunpack.c.l.b16 %v204
    %v244 = vunpack.c.l.b16 %v205
    %v245 = vunpack.c.l.b16 %v206
    %v246 = vunpack.c.l.b16 %v207
    %v247 = vunpack.c.l.b16 %v208
    %v248 = vunpack.c.l.b16 %v209
    %v249 = vpack.c.b16 %v234, %v233
    %v250 = vpack.c.b16 %v236, %v235
    %v251 = vpack.c.b16 %v238, %v237
    %v252 = vpack.c.b16 %v240, %v239
    %v253 = vpack.c.b16 %v242, %v241
    %v254 = vpack.c.b16 %v244, %v243
    %v255 = vpack.c.b16 %v246, %v245
    %v256 = vpack.c.b16 %v248, %v247
    %265 = vmatprep.subr.bf16.mxu0 0
    %266 = vmatpush1.bf16.msra.mxu0 %v256
    %267 = vmatprep.subr.bf16.mxu0 0
    %268 = vmatpush1.bf16.msra.mxu0 %v255
    %269 = vmatprep.subr.bf16.mxu0 0
    %270 = vmatpush1.bf16.msra.mxu0 %v254
    %271 = vmatprep.subr.bf16.mxu0 0
    %272 = vmatpush1.bf16.msra.mxu0 %v253
    %273 = vmatprep.subr.bf16.mxu0 0
    %274 = vmatpush1.bf16.msra.mxu0 %v252
    %275 = vmatprep.subr.bf16.mxu0 0
    %276 = vmatpush1.bf16.msra.mxu0 %v251
    %277 = vmatprep.subr.bf16.mxu0 0
    %278 = vmatpush1.bf16.msra.mxu0 %v250
    %279 = vmatprep.subr.bf16.mxu0 0
    %280 = vmatpush1.bf16.msra.mxu0 %v249
    %281 = vmatprep.subr.bf16.mxu0 0
    %282 = vmatpush2.bf16.msra.mxu0 0
    %283 = vmatprep.subr.bf16.mxu0 0
    %284 = vmatpush2.bf16.msra.mxu0 0
    %285 = vmatprep.subr.bf16.mxu0 0
    %286 = vmatpush2.bf16.msra.mxu0 0
    %287 = vmatprep.subr.bf16.mxu0 0
    %288 = vmatpush2.bf16.msra.mxu0 0
    %289 = vmatprep.subr.bf16.mxu0 0
    %290 = vmatpush2.bf16.msra.mxu0 0
    %291 = vmatprep.subr.bf16.mxu0 0
    %292 = vmatpush2.bf16.msra.mxu0 0
    %293 = vmatprep.subr.bf16.mxu0 0
    %294 = vmatpush2.bf16.msra.mxu0 0
    %295 = vmatprep.subr.bf16.mxu0 0
    %296 = vmatpush2.bf16.msra.mxu0 0
    %297 = vmatprep.mubr.bf16.mxu0 0
    %298 = vmatmul.mubr.bf16.gmra.mxu0 %v193
    %v299 = vpop.f32.mrf.mxu0
    %v300 = vadd.f32 %v215, %v299
    %v301 = vpop.f32.mrf.mxu0
    %v302 = vpop.f32.mrf.mxu0
    %v303 = vpop.f32.mrf.mxu0
    %304 = vdwg.mxu0
    %v305 = vpack.c.bf16 %v300, %v300
    %v306 = vld [vmem:[#allocation8] sm:$0xf]
    %v307 = vld [vmem:[#allocation8 + $0x4] sm:$0xf]
    %v308 = vld [vmem:[#allocation8 + $0x8] sm:$0xf]
    %v309 = vld [vmem:[#allocation8 + $0xc] sm:$0xf]
    %v310 = vld [vmem:[#allocation8 + $0x10] sm:$0xf]
    %v311 = vld [vmem:[#allocation8 + $0x14] sm:$0xf]
    %v312 = vld [vmem:[#allocation8 + $0x18] sm:$0xf]
    %v313 = vld [vmem:[#allocation8 + $0x1c] sm:$0xf]
    %v314 = vld [vmem:[#allocation8 + $0x20] sm:$0xf]
    %v315 = vld [vmem:[#allocation8 + $0x24] sm:$0xf]
    %v316 = vld [vmem:[#allocation8 + $0x28] sm:$0xf]
    %v317 = vld [vmem:[#allocation8 + $0x2c] sm:$0xf]
    %v318 = vld [vmem:[#allocation8 + $0x30] sm:$0xf]
    %v319 = vld [vmem:[#allocation8 + $0x34] sm:$0xf]
    %v320 = vld [vmem:[#allocation8 + $0x38] sm:$0xf]
    %v321 = vld [vmem:[#allocation8 + $0x3c] sm:$0xf]
    %v322 = vld [vmem:[%s6] sm:$0x1]
    %v324 = vlaneseq
    %v325 = vshrl.u32 %v324, 7
    %v326 = vsub.s32 0, %v325
    %v327 = vrot.slane %v322, %v326
    %v345 = vunpack.c.l.b16 %v306
    %v346 = vunpack.c.l.b16 %v307
    %v347 = vunpack.c.l.b16 %v308
    %v348 = vunpack.c.l.b16 %v309
    %v349 = vunpack.c.l.b16 %v310
    %v350 = vunpack.c.l.b16 %v311
    %v351 = vunpack.c.l.b16 %v312
    %v352 = vunpack.c.l.b16 %v313
    %v353 = vunpack.c.l.b16 %v314
    %v354 = vunpack.c.l.b16 %v315
    %v355 = vunpack.c.l.b16 %v316
    %v356 = vunpack.c.l.b16 %v317
    %v357 = vunpack.c.l.b16 %v318
    %v358 = vunpack.c.l.b16 %v319
    %v359 = vunpack.c.l.b16 %v320
    %v360 = vunpack.c.l.b16 %v321
    %v361 = vpack.c.b16 %v346, %v345
    %v362 = vpack.c.b16 %v348, %v347
    %v363 = vpack.c.b16 %v350, %v349
    %v364 = vpack.c.b16 %v352, %v351
    %v365 = vpack.c.b16 %v354, %v353
    %v366 = vpack.c.b16 %v356, %v355
    %v367 = vpack.c.b16 %v358, %v357
    %v368 = vpack.c.b16 %v360, %v359
    %377 = vmatprep.subr.bf16.mxu0 0
    %378 = vmatpush1.bf16.msra.mxu0 %v368
    %379 = vmatprep.subr.bf16.mxu0 0
    %380 = vmatpush1.bf16.msra.mxu0 %v367
    %381 = vmatprep.subr.bf16.mxu0 0
    %382 = vmatpush1.bf16.msra.mxu0 %v366
    %383 = vmatprep.subr.bf16.mxu0 0
    %384 = vmatpush1.bf16.msra.mxu0 %v365
    %385 = vmatprep.subr.bf16.mxu0 0
    %386 = vmatpush1.bf16.msra.mxu0 %v364
    %387 = vmatprep.subr.bf16.mxu0 0
    %388 = vmatpush1.bf16.msra.mxu0 %v363
    %389 = vmatprep.subr.bf16.mxu0 0
    %390 = vmatpush1.bf16.msra.mxu0 %v362
    %391 = vmatprep.subr.bf16.mxu0 0
    %392 = vmatpush1.bf16.msra.mxu0 %v361
    %393 = vmatprep.subr.bf16.mxu0 0
    %394 = vmatpush2.bf16.msra.mxu0 0
    %395 = vmatprep.subr.bf16.mxu0 0
    %396 = vmatpush2.bf16.msra.mxu0 0
    %397 = vmatprep.subr.bf16.mxu0 0
    %398 = vmatpush2.bf16.msra.mxu0 0
    %399 = vmatprep.subr.bf16.mxu0 0
    %400 = vmatpush2.bf16.msra.mxu0 0
    %401 = vmatprep.subr.bf16.mxu0 0
    %402 = vmatpush2.bf16.msra.mxu0 0
    %403 = vmatprep.subr.bf16.mxu0 0
    %404 = vmatpush2.bf16.msra.mxu0 0
    %405 = vmatprep.subr.bf16.mxu0 0
    %406 = vmatpush2.bf16.msra.mxu0 0
    %407 = vmatprep.subr.bf16.mxu0 0
    %408 = vmatpush2.bf16.msra.mxu0 0
    %409 = vmatprep.mubr.bf16.mxu0 0
    %410 = vmatmul.mubr.bf16.gmra.mxu0 %v305
    %v411 = vpop.f32.mrf.mxu0
    %v412 = vadd.f32 %v327, %v411
    %v413 = vpop.f32.mrf.mxu0
    %v414 = vpop.f32.mrf.mxu0
    %v415 = vpop.f32.mrf.mxu0
    %416 = vdwg.mxu0
    %417 = vst [vmem:[#allocation10] sm:$0xff] %v412
    // Predicated region
    $region46: #{tpu_custom_call.1} parent=1 // pred_check
      _
    $region47: #{tpu_custom_call.1} parent=1 // pred_check_branch
      %419 = sbr.rel (0) target = $region49
    $region48: #{tpu_custom_call.1} parent=1 // pred_region
      %s421 = ssub.s32 128, 128
      %422 = vsyncadd [#allocation4], %s421
      %s424 = sshll.u32 [#allocation10], 4
      %s425 = int_to_ptr.vmem [resolvable:$true] %s424
      %427 = dma.vmem_to_hbm [thread:$0]  %s425, 128, %s7, [#allocation4]
    $region49: #{tpu_custom_call.1} parent=1 // pred_fallthru
      _
    // Predicated region
    $region50: #{tpu_custom_call.1} parent=1 // pred_check
      _
    $region51: #{tpu_custom_call.1} parent=1 // pred_check_branch
      %429 = sbr.rel (0) target = $region53
    $region52: #{tpu_custom_call.1} parent=1 // pred_region
      %430 = dma.done [#allocation4], 128
    $region53: #{tpu_custom_call.1} parent=1 // pred_fallthru
      _
    %431 = vsyncpa [#allocation3], 1
    %432 = vsyncpa [#allocation6], 1
    %433 = vsyncpa [#allocation9], 1
    %434 = vsyncpa [#allocation4], 1

// kernel: tpu_custom_call.1
$region0: #{tpu_custom_call.1}
  #allocation0 [shape = 'u32[]', space=smem, size = 0x4, offset = 0x4, fixed_abs, tag = 'smem constant byte address 0x4 - core index']
  #allocation1 [shape = 'u32[144,128]{1,0:T(1,128)}', space=vmem, size = 0x12000, scoped, tag = 'internal scratch']
  %s0 = inlined_call_operand.hbm [shape: bf16[8,128], index: 0, kind: input, shape index: {}]
  %s1 = inlined_call_operand.hbm [shape: bf16[128,128], index: 1, kind: input, shape index: {}]
  %s2 = inlined_call_operand.vmem [shape: f32[1,128], index: 2, kind: input, shape index: {}]
  %s3 = inlined_call_operand.hbm [shape: bf16[128,128], index: 3, kind: input, shape index: {}]
  %s4 = inlined_call_operand.vmem [shape: f32[1,128], index: 4, kind: input, shape index: {}]
  %s5 = inlined_call_operand.hbm [shape: bf16[128,128], index: 5, kind: input, shape index: {}]
  %s6 = inlined_call_operand.vmem [shape: f32[1,128], index: 6, kind: input, shape index: {}]
  %s7 = inlined_call_operand.hbm [shape: f32[8,128], index: 7, kind: output, shape index: {}]
  %s8 = sld [smem:[#allocation0]]
  $region54: #{tpu_custom_call.1} parent=0
    _
  %s10 = ssub.s32 1, %s8
  %s11 = scalar_select 0, %s10, %s8
  $region1: #{tpu_custom_call.1} parent=0
    #allocation2 [shape = 'u8[2048]{0}', space=vmem, size = 0x800, scoped, tag = 'input window, operand 0, single buffered']
    #allocation3 [shape = 's32[1]{0}', space=sflag, size = 0x4, scoped, tag = 'scoped memory for tpu_custom_call.1']
    #allocation4 [shape = 's32[1]{0}', space=sflag, size = 0x4, scoped, tag = 'scoped memory for tpu_custom_call.1']
    #allocation5 [shape = 'u8[32768]{0}', space=vmem, size = 0x8000, scoped, tag = 'input window, operand 1, single buffered']
    #allocation6 [shape = 's32[1]{0}', space=sflag, size = 0x4, scoped, tag = 'scoped memory for tpu_custom_call.1']
    #allocation7 [shape = 'u8[32768]{0}', space=vmem, size = 0x8000, scoped, tag = 'input window, operand 3, single buffered']
    #allocation8 [shape = 'u8[32768]{0}', space=vmem, size = 0x8000, scoped, tag = 'input window, operand 5, single buffered']
    #allocation9 [shape = 's32[1]{0}', space=sflag, size = 0x4, scoped, tag = 'scoped memory for tpu_custom_call.1']
    #allocation10 [shape = 'u8[4096]{0}', space=vmem, size = 0x1000, scoped, tag = 'output window, operand 0, single buffered']
    %12 = vsyncpa [#allocation3], 0
    %13 = vsyncpa [#allocation6], 0
    %14 = vsyncpa [#allocation9], 0
    %15 = vsyncpa [#allocation4], 0
    // Predicated region
    $region2: #{tpu_custom_call.1} parent=1 // pred_check
      _
    $region3: #{tpu_custom_call.1} parent=1 // pred_check_branch
      %17 = sbr.rel (0) target = $region5
    $region4: #{tpu_custom_call.1} parent=1 // pred_region
      %s19 = ssub.s32 64, 64
      %20 = vsyncadd [#allocation3], %s19
      %s22 = sshll.u32 [#allocation2], 4
      %s23 = int_to_ptr.vmem [resolvable:$true] %s22
      %25 = dma.hbm_to_vmem [thread:$0]  %s0, 64, %s23, [#allocation3]
    $region5: #{tpu_custom_call.1} parent=1 // pred_fallthru
      _
    // Predicated region
    $region6: #{tpu_custom_call.1} parent=1 // pred_check
      _
    $region7: #{tpu_custom_call.1} parent=1 // pred_check_branch
      %27 = sbr.rel (0) target = $region9
    $region8: #{tpu_custom_call.1} parent=1 // pred_region
      %s29 = ssub.s32 1024, 1024
      %30 = vsyncadd [#allocation6], %s29
      %s31 = sshll.u32 [#allocation5], 4
      %s32 = int_to_ptr.vmem [resolvable:$true] %s31
      %37 = dma.hbm_to_vmem [thread:$0]  %s1, 1024, %s32, [#allocation6], 64, 64, 4
    $region9: #{tpu_custom_call.1} parent=1 // pred_fallthru
      _
    // Predicated region
    $region10: #{tpu_custom_call.1} parent=1 // pred_check
      _
    $region11: #{tpu_custom_call.1} parent=1 // pred_check_branch
      %39 = sbr.rel (0) target = $region13
    $region12: #{tpu_custom_call.1} parent=1 // pred_region
      _
    $region13: #{tpu_custom_call.1} parent=1 // pred_fallthru
      _
    // Predicated region
    $region14: #{tpu_custom_call.1} parent=1 // pred_check
      _
    $region15: #{tpu_custom_call.1} parent=1 // pred_check_branch
      %41 = sbr.rel (0) target = $region17
    $region16: #{tpu_custom_call.1} parent=1 // pred_region
      %s43 = ssub.s32 1024, 1024
      %44 = vsyncadd [#allocation6], %s43
      %s45 = sshll.u32 [#allocation7], 4
      %s46 = int_to_ptr.vmem [resolvable:$true] %s45
      %51 = dma.hbm_to_vmem [thread:$0]  %s3, 1024, %s46, [#allocation6], 64, 64, 4
    $region17: #{tpu_custom_call.1} parent=1 // pred_fallthru
      _
    // Predicated region
    $region18: #{tpu_custom_call.1} parent=1 // pred_check
      _
    $region19: #{tpu_custom_call.1} parent=1 // pred_check_branch
      %53 = sbr.rel (0) target = $region21
    $region20: #{tpu_custom_call.1} parent=1 // pred_region
      _
    $region21: #{tpu_custom_call.1} parent=1 // pred_fallthru
      _
    // Predicated region
    $region22: #{tpu_custom_call.1} parent=1 // pred_check
      _
    $region23: #{tpu_custom_call.1} parent=1 // pred_check_branch
      %55 = sbr.rel (0) target = $region25
    $region24: #{tpu_custom_call.1} parent=1 // pred_region
      %s57 = ssub.s32 1024, 1024
      %58 = vsyncadd [#allocation9], %s57
      %s59 = sshll.u32 [#allocation8], 4
      %s60 = int_to_ptr.vmem [resolvable:$true] %s59
      %65 = dma.hbm_to_vmem [thread:$0]  %s5, 1024, %s60, [#allocation9], 64, 64, 4
    $region25: #{tpu_custom_call.1} parent=1 // pred_fallthru
      _
    // Predicated region
    $region26: #{tpu_custom_call.1} parent=1 // pred_check
      _
    $region27: #{tpu_custom_call.1} parent=1 // pred_check_branch
      %67 = sbr.rel (0) target = $region29
    $region28: #{tpu_custom_call.1} parent=1 // pred_region
      _
    $region29: #{tpu_custom_call.1} parent=1 // pred_fallthru
      _
    // Predicated region
    $region30: #{tpu_custom_call.1} parent=1 // pred_check
      _
    $region31: #{tpu_custom_call.1} parent=1 // pred_check_branch
      %69 = sbr.rel (0) target = $region33
    $region32: #{tpu_custom_call.1} parent=1 // pred_region
      %70 = dma.done [#allocation3], 64
    $region33: #{tpu_custom_call.1} parent=1 // pred_fallthru
      _
    // Predicated region
    $region34: #{tpu_custom_call.1} parent=1 // pred_check
      _
    $region35: #{tpu_custom_call.1} parent=1 // pred_check_branch
      %72 = sbr.rel (0) target = $region37
    $region36: #{tpu_custom_call.1} parent=1 // pred_region
      %73 = dma.done [#allocation6], 1024
    $region37: #{tpu_custom_call.1} parent=1 // pred_fallthru
      _
    // Predicated region
    $region38: #{tpu_custom_call.1} parent=1 // pred_check
      _
    $region39: #{tpu_custom_call.1} parent=1 // pred_check_branch
      %75 = sbr.rel (0) target = $region41
    $region40: #{tpu_custom_call.1} parent=1 // pred_region
      %76 = dma.done [#allocation6], 1024
    $region41: #{tpu_custom_call.1} parent=1 // pred_fallthru
      _
    // Predicated region
    $region42: #{tpu_custom_call.1} parent=1 // pred_check
      _
    $region43: #{tpu_custom_call.1} parent=1 // pred_check_branch
      %78 = sbr.rel (0) target = $region45
    $region44: #{tpu_custom_call.1} parent=1 // pred_region
      %79 = dma.done [#allocation9], 1024
    $region45: #{tpu_custom_call.1} parent=1 // pred_fallthru
      _
    %v81 = vld [vmem:[#allocation2] sm:$0xf]
    %v82 = vld [vmem:[#allocation5] sm:$0xf]
    %v83 = vld [vmem:[#allocation5 + $0x4] sm:$0xf]
    %v84 = vld [vmem:[#allocation5 + $0x8] sm:$0xf]
    %v85 = vld [vmem:[#allocation5 + $0xc] sm:$0xf]
    %v86 = vld [vmem:[#allocation5 + $0x10] sm:$0xf]
    %v87 = vld [vmem:[#allocation5 + $0x14] sm:$0xf]
    %v88 = vld [vmem:[#allocation5 + $0x18] sm:$0xf]
    %v89 = vld [vmem:[#allocation5 + $0x1c] sm:$0xf]
    %v90 = vld [vmem:[#allocation5 + $0x20] sm:$0xf]
    %v91 = vld [vmem:[#allocation5 + $0x24] sm:$0xf]
    %v92 = vld [vmem:[#allocation5 + $0x28] sm:$0xf]
    %v93 = vld [vmem:[#allocation5 + $0x2c] sm:$0xf]
    %v94 = vld [vmem:[#allocation5 + $0x30] sm:$0xf]
    %v95 = vld [vmem:[#allocation5 + $0x34] sm:$0xf]
    %v96 = vld [vmem:[#allocation5 + $0x38] sm:$0xf]
    %v97 = vld [vmem:[#allocation5 + $0x3c] sm:$0xf]
    %v98 = vld [vmem:[%s2] sm:$0x1]
    %v100 = vlaneseq
    %v101 = vshrl.u32 %v100, 7
    %v102 = vsub.s32 0, %v101
    %v103 = vrot.slane %v98, %v102
    %v121 = vunpack.c.l.b16 %v82
    %v122 = vunpack.c.l.b16 %v83
    %v123 = vunpack.c.l.b16 %v84
    %v124 = vunpack.c.l.b16 %v85
    %v125 = vunpack.c.l.b16 %v86
    %v126 = vunpack.c.l.b16 %v87
    %v127 = vunpack.c.l.b16 %v88
    %v128 = vunpack.c.l.b16 %v89
    %v129 = vunpack.c.l.b16 %v90
    %v130 = vunpack.c.l.b16 %v91
    %v131 = vunpack.c.l.b16 %v92
    %v132 = vunpack.c.l.b16 %v93
    %v133 = vunpack.c.l.b16 %v94
    %v134 = vunpack.c.l.b16 %v95
    %v135 = vunpack.c.l.b16 %v96
    %v136 = vunpack.c.l.b16 %v97
    %v137 = vpack.c.b16 %v122, %v121
    %v138 = vpack.c.b16 %v124, %v123
    %v139 = vpack.c.b16 %v126, %v125
    %v140 = vpack.c.b16 %v128, %v127
    %v141 = vpack.c.b16 %v130, %v129
    %v142 = vpack.c.b16 %v132, %v131
    %v143 = vpack.c.b16 %v134, %v133
    %v144 = vpack.c.b16 %v136, %v135
    %153 = vmatprep.subr.bf16.mxu0 0
    %154 = vmatpush1.bf16.msra.mxu0 %v144
    %155 = vmatprep.subr.bf16.mxu0 0
    %156 = vmatpush1.bf16.msra.mxu0 %v143
    %157 = vmatprep.subr.bf16.mxu0 0
    %158 = vmatpush1.bf16.msra.mxu0 %v142
    %159 = vmatprep.subr.bf16.mxu0 0
    %160 = vmatpush1.bf16.msra.mxu0 %v141
    %161 = vmatprep.subr.bf16.mxu0 0
    %162 = vmatpush1.bf16.msra.mxu0 %v140
    %163 = vmatprep.subr.bf16.mxu0 0
    %164 = vmatpush1.bf16.msra.mxu0 %v139
    %165 = vmatprep.subr.bf16.mxu0 0
    %166 = vmatpush1.bf16.msra.mxu0 %v138
    %167 = vmatprep.subr.bf16.mxu0 0
    %168 = vmatpush1.bf16.msra.mxu0 %v137
    %169 = vmatprep.subr.bf16.mxu0 0
    %170 = vmatpush2.bf16.msra.mxu0 0
    %171 = vmatprep.subr.bf16.mxu0 0
    %172 = vmatpush2.bf16.msra.mxu0 0
    %173 = vmatprep.subr.bf16.mxu0 0
    %174 = vmatpush2.bf16.msra.mxu0 0
    %175 = vmatprep.subr.bf16.mxu0 0
    %176 = vmatpush2.bf16.msra.mxu0 0
    %177 = vmatprep.subr.bf16.mxu0 0
    %178 = vmatpush2.bf16.msra.mxu0 0
    %179 = vmatprep.subr.bf16.mxu0 0
    %180 = vmatpush2.bf16.msra.mxu0 0
    %181 = vmatprep.subr.bf16.mxu0 0
    %182 = vmatpush2.bf16.msra.mxu0 0
    %183 = vmatprep.subr.bf16.mxu0 0
    %184 = vmatpush2.bf16.msra.mxu0 0
    %185 = vmatprep.mubr.bf16.mxu0 0
    %186 = vmatmul.mubr.bf16.gmra.mxu0 %v81
    %v187 = vpop.f32.mrf.mxu0
    %v188 = vadd.f32 %v103, %v187
    %v189 = vpop.f32.mrf.mxu0
    %v190 = vpop.f32.mrf.mxu0
    %v191 = vpop.f32.mrf.mxu0
    %192 = vdwg.mxu0
    %v193 = vpack.c.bf16 %v188, %v188
    %v194 = vld [vmem:[#allocation7] sm:$0xf]
    %v195 = vld [vmem:[#allocation7 + $0x4] sm:$0xf]
    %v196 = vld [vmem:[#allocation7 + $0x8] sm:$0xf]
    %v197 = vld [vmem:[#allocation7 + $0xc] sm:$0xf]
    %v198 = vld [vmem:[#allocation7 + $0x10] sm:$0xf]
    %v199 = vld [vmem:[#allocation7 + $0x14] sm:$0xf]
    %v200 = vld [vmem:[#allocation7 + $0x18] sm:$0xf]
    %v201 = vld [vmem:[#allocation7 + $0x1c] sm:$0xf]
    %v202 = vld [vmem:[#allocation7 + $0x20] sm:$0xf]
    %v203 = vld [vmem:[#allocation7 + $0x24] sm:$0xf]
    %v204 = vld [vmem:[#allocation7 + $0x28] sm:$0xf]
    %v205 = vld [vmem:[#allocation7 + $0x2c] sm:$0xf]
    %v206 = vld [vmem:[#allocation7 + $0x30] sm:$0xf]
    %v207 = vld [vmem:[#allocation7 + $0x34] sm:$0xf]
    %v208 = vld [vmem:[#allocation7 + $0x38] sm:$0xf]
    %v209 = vld [vmem:[#allocation7 + $0x3c] sm:$0xf]
    %v210 = vld [vmem:[%s4] sm:$0x1]
    %v212 = vlaneseq
    %v213 = vshrl.u32 %v212, 7
    %v214 = vsub.s32 0, %v213
    %v215 = vrot.slane %v210, %v214
    %v233 = vunpack.c.l.b16 %v194
    %v234 = vunpack.c.l.b16 %v195
    %v235 = vunpack.c.l.b16 %v196
    %v236 = vunpack.c.l.b16 %v197
    %v237 = vunpack.c.l.b16 %v198
    %v238 = vunpack.c.l.b16 %v199
    %v239 = vunpack.c.l.b16 %v200
    %v240 = vunpack.c.l.b16 %v201
    %v241 = vunpack.c.l.b16 %v202
    %v242 = vunpack.c.l.b16 %v203
    %v243 = vunpack.c.l.b16 %v204
    %v244 = vunpack.c.l.b16 %v205
    %v245 = vunpack.c.l.b16 %v206
    %v246 = vunpack.c.l.b16 %v207
    %v247 = vunpack.c.l.b16 %v208
    %v248 = vunpack.c.l.b16 %v209
    %v249 = vpack.c.b16 %v234, %v233
    %v250 = vpack.c.b16 %v236, %v235
    %v251 = vpack.c.b16 %v238, %v237
    %v252 = vpack.c.b16 %v240, %v239
    %v253 = vpack.c.b16 %v242, %v241
    %v254 = vpack.c.b16 %v244, %v243
    %v255 = vpack.c.b16 %v246, %v245
    %v256 = vpack.c.b16 %v248, %v247
    %265 = vmatprep.subr.bf16.mxu0 0
    %266 = vmatpush1.bf16.msra.mxu0 %v256
    %267 = vmatprep.subr.bf16.mxu0 0
    %268 = vmatpush1.bf16.msra.mxu0 %v255
    %269 = vmatprep.subr.bf16.mxu0 0
    %270 = vmatpush1.bf16.msra.mxu0 %v254
    %271 = vmatprep.subr.bf16.mxu0 0
    %272 = vmatpush1.bf16.msra.mxu0 %v253
    %273 = vmatprep.subr.bf16.mxu0 0
    %274 = vmatpush1.bf16.msra.mxu0 %v252
    %275 = vmatprep.subr.bf16.mxu0 0
    %276 = vmatpush1.bf16.msra.mxu0 %v251
    %277 = vmatprep.subr.bf16.mxu0 0
    %278 = vmatpush1.bf16.msra.mxu0 %v250
    %279 = vmatprep.subr.bf16.mxu0 0
    %280 = vmatpush1.bf16.msra.mxu0 %v249
    %281 = vmatprep.subr.bf16.mxu0 0
    %282 = vmatpush2.bf16.msra.mxu0 0
    %283 = vmatprep.subr.bf16.mxu0 0
    %284 = vmatpush2.bf16.msra.mxu0 0
    %285 = vmatprep.subr.bf16.mxu0 0
    %286 = vmatpush2.bf16.msra.mxu0 0
    %287 = vmatprep.subr.bf16.mxu0 0
    %288 = vmatpush2.bf16.msra.mxu0 0
    %289 = vmatprep.subr.bf16.mxu0 0
    %290 = vmatpush2.bf16.msra.mxu0 0
    %291 = vmatprep.subr.bf16.mxu0 0
    %292 = vmatpush2.bf16.msra.mxu0 0
    %293 = vmatprep.subr.bf16.mxu0 0
    %294 = vmatpush2.bf16.msra.mxu0 0
    %295 = vmatprep.subr.bf16.mxu0 0
    %296 = vmatpush2.bf16.msra.mxu0 0
    %297 = vmatprep.mubr.bf16.mxu0 0
    %298 = vmatmul.mubr.bf16.gmra.mxu0 %v193
    %v299 = vpop.f32.mrf.mxu0
    %v300 = vadd.f32 %v215, %v299
    %v301 = vpop.f32.mrf.mxu0
    %v302 = vpop.f32.mrf.mxu0
    %v303 = vpop.f32.mrf.mxu0
    %304 = vdwg.mxu0
    %v305 = vpack.c.bf16 %v300, %v300
    %v306 = vld [vmem:[#allocation8] sm:$0xf]
    %v307 = vld [vmem:[#allocation8 + $0x4] sm:$0xf]
    %v308 = vld [vmem:[#allocation8 + $0x8] sm:$0xf]
    %v309 = vld [vmem:[#allocation8 + $0xc] sm:$0xf]
    %v310 = vld [vmem:[#allocation8 + $0x10] sm:$0xf]
    %v311 = vld [vmem:[#allocation8 + $0x14] sm:$0xf]
    %v312 = vld [vmem:[#allocation8 + $0x18] sm:$0xf]
    %v313 = vld [vmem:[#allocation8 + $0x1c] sm:$0xf]
    %v314 = vld [vmem:[#allocation8 + $0x20] sm:$0xf]
    %v315 = vld [vmem:[#allocation8 + $0x24] sm:$0xf]
    %v316 = vld [vmem:[#allocation8 + $0x28] sm:$0xf]
    %v317 = vld [vmem:[#allocation8 + $0x2c] sm:$0xf]
    %v318 = vld [vmem:[#allocation8 + $0x30] sm:$0xf]
    %v319 = vld [vmem:[#allocation8 + $0x34] sm:$0xf]
    %v320 = vld [vmem:[#allocation8 + $0x38] sm:$0xf]
    %v321 = vld [vmem:[#allocation8 + $0x3c] sm:$0xf]
    %v322 = vld [vmem:[%s6] sm:$0x1]
    %v324 = vlaneseq
    %v325 = vshrl.u32 %v324, 7
    %v326 = vsub.s32 0, %v325
    %v327 = vrot.slane %v322, %v326
    %v345 = vunpack.c.l.b16 %v306
    %v346 = vunpack.c.l.b16 %v307
    %v347 = vunpack.c.l.b16 %v308
    %v348 = vunpack.c.l.b16 %v309
    %v349 = vunpack.c.l.b16 %v310
    %v350 = vunpack.c.l.b16 %v311
    %v351 = vunpack.c.l.b16 %v312
    %v352 = vunpack.c.l.b16 %v313
    %v353 = vunpack.c.l.b16 %v314
    %v354 = vunpack.c.l.b16 %v315
    %v355 = vunpack.c.l.b16 %v316
    %v356 = vunpack.c.l.b16 %v317
    %v357 = vunpack.c.l.b16 %v318
    %v358 = vunpack.c.l.b16 %v319
    %v359 = vunpack.c.l.b16 %v320
    %v360 = vunpack.c.l.b16 %v321
    %v361 = vpack.c.b16 %v346, %v345
    %v362 = vpack.c.b16 %v348, %v347
    %v363 = vpack.c.b16 %v350, %v349
    %v364 = vpack.c.b16 %v352, %v351
    %v365 = vpack.c.b16 %v354, %v353
    %v366 = vpack.c.b16 %v356, %v355
    %v367 = vpack.c.b16 %v358, %v357
    %v368 = vpack.c.b16 %v360, %v359
    %377 = vmatprep.subr.bf16.mxu0 0
    %378 = vmatpush1.bf16.msra.mxu0 %v368
    %379 = vmatprep.subr.bf16.mxu0 0
    %380 = vmatpush1.bf16.msra.mxu0 %v367
    %381 = vmatprep.subr.bf16.mxu0 0
    %382 = vmatpush1.bf16.msra.mxu0 %v366
    %383 = vmatprep.subr.bf16.mxu0 0
    %384 = vmatpush1.bf16.msra.mxu0 %v365
    %385 = vmatprep.subr.bf16.mxu0 0
    %386 = vmatpush1.bf16.msra.mxu0 %v364
    %387 = vmatprep.subr.bf16.mxu0 0
    %388 = vmatpush1.bf16.msra.mxu0 %v363
    %389 = vmatprep.subr.bf16.mxu0 0
    %390 = vmatpush1.bf16.msra.mxu0 %v362
    %391 = vmatprep.subr.bf16.mxu0 0
    %392 = vmatpush1.bf16.msra.mxu0 %v361
    %393 = vmatprep.subr.bf16.mxu0 0
    %394 = vmatpush2.bf16.msra.mxu0 0
    %395 = vmatprep.subr.bf16.mxu0 0
    %396 = vmatpush2.bf16.msra.mxu0 0
    %397 = vmatprep.subr.bf16.mxu0 0
    %398 = vmatpush2.bf16.msra.mxu0 0
    %399 = vmatprep.subr.bf16.mxu0 0
    %400 = vmatpush2.bf16.msra.mxu0 0
    %401 = vmatprep.subr.bf16.mxu0 0
    %402 = vmatpush2.bf16.msra.mxu0 0
    %403 = vmatprep.subr.bf16.mxu0 0
    %404 = vmatpush2.bf16.msra.mxu0 0
    %405 = vmatprep.subr.bf16.mxu0 0
    %406 = vmatpush2.bf16.msra.mxu0 0
    %407 = vmatprep.subr.bf16.mxu0 0
    %408 = vmatpush2.bf16.msra.mxu0 0
    %409 = vmatprep.mubr.bf16.mxu0 0
    %410 = vmatmul.mubr.bf16.gmra.mxu0 %v305
    %v411 = vpop.f32.mrf.mxu0
    %v412 = vadd.f32 %v327, %v411
    %v413 = vpop.f32.mrf.mxu0
    %v414 = vpop.f32.mrf.mxu0
    %v415 = vpop.f32.mrf.mxu0
    %416 = vdwg.mxu0
    %417 = vst [vmem:[#allocation10] sm:$0xff] %v412
    // Predicated region
    $region46: #{tpu_custom_call.1} parent=1 // pred_check
      _
    $region47: #{tpu_custom_call.1} parent=1 // pred_check_branch
      %419 = sbr.rel (0) target = $region49
    $region48: #{tpu_custom_call.1} parent=1 // pred_region
      %s421 = ssub.s32 128, 128
      %422 = vsyncadd [#allocation4], %s421
      %s424 = sshll.u32 [#allocation10], 4
      %s425 = int_to_ptr.vmem [resolvable:$true] %s424
      %427 = dma.vmem_to_hbm [thread:$0]  %s425, 128, %s7, [#allocation4]
    $region49: #{tpu_custom_call.1} parent=1 // pred_fallthru
      _
    // Predicated region
    $region50: #{tpu_custom_call.1} parent=1 // pred_check
      _
    $region51: #{tpu_custom_call.1} parent=1 // pred_check_branch
      %429 = sbr.rel (0) target = $region53
    $region52: #{tpu_custom_call.1} parent=1 // pred_region
      %430 = dma.done [#allocation4], 128
    $region53: #{tpu_custom_call.1} parent=1 // pred_fallthru
      _
    %431 = vsyncpa [#allocation3], 1
    %432 = vsyncpa [#allocation6], 1
    %433 = vsyncpa [#allocation9], 1
    %434 = vsyncpa [#allocation4], 1

</llo_original>
